<compile_context>
chip_gen: v7x
topology: tpu7x:2x2x1
jax: 0.10.0
libtpu: 0.0.40
codegen_flags: <defaults>
</compile_context>

<pallas_src>
import jax
import jax.numpy as jnp
from jax.experimental import pallas as pl
from jax.experimental.pallas import tpu as pltpu

HIDDEN = 32


def _round_up(x, m):
    return ((x + m - 1) // m) * m


def _mlp_kernel(x_ref, w1_ref, b1_ref, w2_ref, b2_ref, o_ref):
    """One batch tile: Linear(d_in->32) + ReLU + Linear(32->n_actions).

    Both matmuls run on the MXU with f32 accumulation; ReLU / bias adds on the VPU.
    """
    x = x_ref[...]                                                    # [TB, D_in] f32
    h = jnp.dot(x, w1_ref[...],
                preferred_element_type=jnp.float32) + b1_ref[...]     # [TB, 32]
    h = jnp.maximum(h, 0.0)                                           # ReLU
    y = jnp.dot(h, w2_ref[...],
                preferred_element_type=jnp.float32) + b2_ref[...]     # [TB, n_actions]
    o_ref[...] = y                                                    # narrow store


def make_cartpole_forward(w1, b1, w2, b2, *, block_b=1024):
    """Prepare PyTorch-layout params once; return jitted forward: x[B,D] -> [B, n_actions].

    w1: [32, D_in]   b1: [32]   w2: [n_actions, 32]   b2: [n_actions]
    """
    d_in = w1.shape[1]
    hidden = w1.shape[0]
    n_actions = w2.shape[0]

    # One-time parameter prep (NOT in the per-call path): [out,in] -> [in,out].
    w1_t = jnp.asarray(w1, jnp.float32).T                         # [D_in, 32]
    b1_r = jnp.asarray(b1, jnp.float32).reshape(1, hidden)        # [1, 32]
    w2_t = jnp.asarray(w2, jnp.float32).T                         # [32, n_actions]
    b2_r = jnp.asarray(b2, jnp.float32).reshape(1, n_actions)     # [1, n_actions]

    @jax.jit
    def forward(x):
        x = x.astype(jnp.float32)
        batch = x.shape[0]
        # Batch tile: multiple of 8 sublanes, capped at block_b.  Large tiles
        # amortize the ~0.35us/grid-step overhead; ragged tails are handled by
        # Pallas edge-block clipping (no jnp.pad of x, no output slice).
        tb = min(block_b, _round_up(batch, 8))
        grid = (pl.cdiv(batch, tb),)

        flops = 2 * batch * (d_in * hidden + hidden * n_actions)
        bytes_accessed = 4 * (batch * d_in + d_in * hidden + hidden
                              + hidden * n_actions + n_actions
                              + batch * n_actions)

        return pl.pallas_call(
            _mlp_kernel,
            out_shape=jax.ShapeDtypeStruct((batch, n_actions), jnp.float32),
            grid=grid,
            in_specs=[
                pl.BlockSpec((tb, d_in), lambda i: (i, 0)),
                # Constant index_maps: weights / biases are DMA'd once and stay
                # VMEM-resident across all batch-tile grid steps.
                pl.BlockSpec((d_in, hidden), lambda i: (0, 0)),
                pl.BlockSpec((1, hidden), lambda i: (0, 0)),
                pl.BlockSpec((hidden, n_actions), lambda i: (0, 0)),
                pl.BlockSpec((1, n_actions), lambda i: (0, 0)),
            ],
            out_specs=pl.BlockSpec((tb, n_actions), lambda i: (i, 0)),
            # v7x: use pltpu.CORE_PARALLEL here to guarantee dual-TC sharding of
            # the batch axis; "parallel" kept for portability to v5e/v6e.
            compiler_params=pltpu.CompilerParams(
                dimension_semantics=("parallel",)),
            cost_estimate=pl.CostEstimate(
                flops=flops, transcendentals=0, bytes_accessed=bytes_accessed),
        )(x, w1_t, b1_r, w2_t, b2_r)

    return forward


if __name__ == "__main__":
    # CartPole: observation dim 4, 2 actions.  Small batch.
    batch, d_in, n_actions = 8, 4, 2

    key = jax.random.PRNGKey(0)
    kx, kw1, kb1, kw2, kb2 = jax.random.split(key, 5)

    x = jax.random.normal(kx, (batch, d_in), dtype=jnp.float32)
    # PyTorch Linear weight layout: [out, in].
    w1 = jax.random.normal(kw1, (HIDDEN, d_in), dtype=jnp.float32) * 0.1
    b1 = jax.random.normal(kb1, (HIDDEN,), dtype=jnp.float32) * 0.1
    w2 = jax.random.normal(kw2, (n_actions, HIDDEN), dtype=jnp.float32) * 0.1
    b2 = jax.random.normal(kb2, (n_actions,), dtype=jnp.float32) * 0.1

    forward = make_cartpole_forward(w1, b1, w2, b2)

    def ref_fn(xs):
        # Pure-JAX reference (same math as the PyTorch module).
        return jnp.maximum(xs @ w1.T + b1, 0.0) @ w2.T + b2

    # Small batch: single (8-row) tile, exercises the block-larger-than-needed path.
    out = forward(x)
    jax.block_until_ready(out)
    assert out.shape == (batch, n_actions)
    # 1e-4 tolerance: allows for MXU f32 pass-count / summation-order differences
    # across TPU generations; any real indexing/layout bug gives O(0.1-1) errors.
    assert jnp.allclose(out, ref_fn(x), atol=1e-4, rtol=1e-4)

    # Large ragged batch: multi-tile grid (3 tiles of 1024) with a clipped 452-row
    # tail -- exercises the no-pad / no-slice edge-block path.
    xb = jax.random.normal(kx, (2500, d_in), dtype=jnp.float32)
    outb = forward(xb)
    jax.block_until_ready(outb)
    assert outb.shape == (2500, n_actions)
    assert jnp.allclose(outb, ref_fn(xb), atol=1e-4, rtol=1e-4)

    print("KERNEL_OK")
</pallas_src>

<mosaic_0001>
module attributes {stable_mosaic.version = 11 : i64} {
  func.func @_mlp_kernel(%arg0: i32, %arg1: memref<8x4xf32, #tpu.memory_space<vmem>>, %arg2: memref<4x32xf32, #tpu.memory_space<vmem>>, %arg3: memref<1x32xf32, #tpu.memory_space<vmem>>, %arg4: memref<32x2xf32, #tpu.memory_space<vmem>>, %arg5: memref<1x2xf32, #tpu.memory_space<vmem>>, %arg6: memref<8x2xf32, #tpu.memory_space<vmem>>) attributes {dimension_semantics = [#tpu.dimension_semantics<parallel>], iteration_bounds = array<i64: 1>, scalar_prefetch = 0 : i64, scratch_operands = 0 : i64, tpu.core_type = #tpu.core_type<tc>, window_params = [{transform_indices = @transform_0, window_bounds = array<i64: 8, 4>}, {pipeline_mode = #tpu.pipeline_mode<synchronous>, transform_indices = @transform_1, window_bounds = array<i64: 4, 32>}, {pipeline_mode = #tpu.pipeline_mode<synchronous>, transform_indices = @transform_2, window_bounds = array<i64: 1, 32>}, {pipeline_mode = #tpu.pipeline_mode<synchronous>, transform_indices = @transform_3, window_bounds = array<i64: 32, 2>}, {pipeline_mode = #tpu.pipeline_mode<synchronous>, transform_indices = @transform_4, window_bounds = array<i64: 1, 2>}, {transform_indices = @transform_5, window_bounds = array<i64: 8, 2>}]} {
    %c0 = arith.constant 0 : index
    %c0_0 = arith.constant 0 : index
    %0 = vector.load %arg1[%c0, %c0_0] : memref<8x4xf32, #tpu.memory_space<vmem>>, vector<8x4xf32>
    %c0_1 = arith.constant 0 : index
    %c0_2 = arith.constant 0 : index
    %1 = vector.load %arg2[%c0_1, %c0_2] : memref<4x32xf32, #tpu.memory_space<vmem>>, vector<4x32xf32>
    %cst = arith.constant dense<0.000000e+00> : vector<8x32xf32>
    %2 = tpu.matmul %0, %1, %cst {dimension_numbers = #tpu.dot_dimension_numbers<[1], [0], [0], [1], [0, 0, 1, 1], [], []>} : vector<8x4xf32>, vector<4x32xf32>, vector<8x32xf32> -> vector<8x32xf32>
    %c0_3 = arith.constant 0 : index
    %c0_4 = arith.constant 0 : index
    %3 = vector.load %arg3[%c0_3, %c0_4] : memref<1x32xf32, #tpu.memory_space<vmem>>, vector<1x32xf32>
    %4 = vector.broadcast %3 : vector<1x32xf32> to vector<8x32xf32>
    %5 = arith.addf %2, %4 : vector<8x32xf32>
    %cst_5 = arith.constant 0.000000e+00 : f32
    %6 = vector.broadcast %cst_5 : f32 to vector<8x32xf32>
    %7 = arith.maximumf %5, %6 : vector<8x32xf32>
    %c0_6 = arith.constant 0 : index
    %c0_7 = arith.constant 0 : index
    %8 = vector.load %arg4[%c0_6, %c0_7] : memref<32x2xf32, #tpu.memory_space<vmem>>, vector<32x2xf32>
    %cst_8 = arith.constant dense<0.000000e+00> : vector<8x2xf32>
    %9 = tpu.matmul %7, %8, %cst_8 {dimension_numbers = #tpu.dot_dimension_numbers<[1], [0], [0], [1], [0, 0, 1, 1], [], []>} : vector<8x32xf32>, vector<32x2xf32>, vector<8x2xf32> -> vector<8x2xf32>
    %c0_9 = arith.constant 0 : index
    %c0_10 = arith.constant 0 : index
    %10 = vector.load %arg5[%c0_9, %c0_10] : memref<1x2xf32, #tpu.memory_space<vmem>>, vector<1x2xf32>
    %11 = vector.broadcast %10 : vector<1x2xf32> to vector<8x2xf32>
    %12 = arith.addf %9, %11 : vector<8x2xf32>
    %c0_11 = arith.constant 0 : index
    %c0_12 = arith.constant 0 : index
    %13 = vector.load %arg6[%c0_11, %c0_12] : memref<8x2xf32, #tpu.memory_space<vmem>>, vector<8x2xf32>
    tpu.vector_store %arg6[%c0_11, %c0_12], %12 {strides = array<i32>} : memref<8x2xf32, #tpu.memory_space<vmem>>, vector<8x2xf32>,
    return
  }
  func.func @transform_0(%arg0: i32) -> (i32, i32) {
    %c0_i32 = arith.constant 0 : i32
    %c0_i32_0 = arith.constant 0 : i32
    return %arg0, %c0_i32 : i32, i32
  }
  func.func @transform_1(%arg0: i32) -> (i32, i32) {
    %c0_i32 = arith.constant 0 : i32
    %c0_i32_0 = arith.constant 0 : i32
    %c0_i32_1 = arith.constant 0 : i32
    return %c0_i32, %c0_i32_0 : i32, i32
  }
  func.func @transform_2(%arg0: i32) -> (i32, i32) {
    %c0_i32 = arith.constant 0 : i32
    %c0_i32_0 = arith.constant 0 : i32
    %c0_i32_1 = arith.constant 0 : i32
    return %c0_i32, %c0_i32_0 : i32, i32
  }
  func.func @transform_3(%arg0: i32) -> (i32, i32) {
    %c0_i32 = arith.constant 0 : i32
    %c0_i32_0 = arith.constant 0 : i32
    %c0_i32_1 = arith.constant 0 : i32
    return %c0_i32, %c0_i32_0 : i32, i32
  }
  func.func @transform_4(%arg0: i32) -> (i32, i32) {
    %c0_i32 = arith.constant 0 : i32
    %c0_i32_0 = arith.constant 0 : i32
    %c0_i32_1 = arith.constant 0 : i32
    return %c0_i32, %c0_i32_0 : i32, i32
  }
  func.func @transform_5(%arg0: i32) -> (i32, i32) {
    %c0_i32 = arith.constant 0 : i32
    %c0_i32_0 = arith.constant 0 : i32
    return %arg0, %c0_i32 : i32, i32
  }
}

</mosaic_0001>

<llo_original>
// kernel: forward.1
$region0: #{forward.1}
  #allocation0 [shape = 'u32[]', space=smem, size = 0x4, offset = 0x4, fixed_abs, tag = 'smem constant byte address 0x4 - core index']
  #allocation1 [shape = 'u32[144,128]{1,0:T(1,128)}', space=vmem, size = 0x12000, scoped, tag = 'internal scratch']
  %s0 = inlined_call_operand.vmem [shape: f32[8,4], index: 0, kind: input, shape index: {}]
  %s1 = inlined_call_operand.vmem [shape: f32[4,32], index: 1, kind: input, shape index: {}]
  %s2 = inlined_call_operand.vmem [shape: f32[1,32], index: 2, kind: input, shape index: {}]
  %s3 = inlined_call_operand.hbm [shape: f32[32,2], index: 3, kind: input, shape index: {}]
  %s4 = inlined_call_operand.vmem [shape: f32[1,2], index: 4, kind: input, shape index: {}]
  %s5 = inlined_call_operand.vmem [shape: f32[8,2], index: 5, kind: output, shape index: {}]
  %s6 = sld [smem:[#allocation0]]
  $region34: #{forward.1} parent=0
    _
  %s8 = ssub.s32 1, %s6
  %s9 = scalar_select 0, %s8, %s6
  $region1: #{forward.1} parent=0
    #allocation2 [shape = 'u8[16384]{0}', space=vmem, size = 0x4000, scoped, tag = 'input window, operand 3, single buffered']
    #allocation3 [shape = 's32[1]{0}', space=sflag, size = 0x4, scoped, tag = 'scoped memory for forward.1']
    %10 = vsyncpa [#allocation3], 0
    // Predicated region
    $region2: #{forward.1} parent=1 // pred_check
      _
    $region3: #{forward.1} parent=1 // pred_check_branch
      %12 = sbr.rel (0) target = $region5
    $region4: #{forward.1} parent=1 // pred_region
      _
    $region5: #{forward.1} parent=1 // pred_fallthru
      _
    // Predicated region
    $region6: #{forward.1} parent=1 // pred_check
      _
    $region7: #{forward.1} parent=1 // pred_check_branch
      %14 = sbr.rel (0) target = $region9
    $region8: #{forward.1} parent=1 // pred_region
      _
    $region9: #{forward.1} parent=1 // pred_fallthru
      _
    // Predicated region
    $region10: #{forward.1} parent=1 // pred_check
      _
    $region11: #{forward.1} parent=1 // pred_check_branch
      %16 = sbr.rel (0) target = $region13
    $region12: #{forward.1} parent=1 // pred_region
      _
    $region13: #{forward.1} parent=1 // pred_fallthru
      _
    // Predicated region
    $region14: #{forward.1} parent=1 // pred_check
      _
    $region15: #{forward.1} parent=1 // pred_check_branch
      %18 = sbr.rel (0) target = $region17
    $region16: #{forward.1} parent=1 // pred_region
      %s20 = ssub.s32 512, 512
      %21 = vsyncadd [#allocation3], %s20
      %s22 = sshll.u32 [#allocation2], 4
      %s23 = int_to_ptr.vmem [resolvable:$true] %s22
      %28 = dma.hbm_to_vmem [thread:$0]  %s3, 512, %s23, [#allocation3], 128, 128, 8
    $region17: #{forward.1} parent=1 // pred_fallthru
      _
    // Predicated region
    $region18: #{forward.1} parent=1 // pred_check
      _
    $region19: #{forward.1} parent=1 // pred_check_branch
      %30 = sbr.rel (0) target = $region21
    $region20: #{forward.1} parent=1 // pred_region
      _
    $region21: #{forward.1} parent=1 // pred_fallthru
      _
    // Predicated region
    $region22: #{forward.1} parent=1 // pred_check
      _
    $region23: #{forward.1} parent=1 // pred_check_branch
      %32 = sbr.rel (0) target = $region25
    $region24: #{forward.1} parent=1 // pred_region
      %33 = dma.done [#allocation3], 512
    $region25: #{forward.1} parent=1 // pred_fallthru
      _
    %v34 = vld [vmem:[%s0] sm:$0xff]
    %v35 = vld [vmem:[%s1] sm:$0xf]
    %v36 = vld [vmem:[%s2] sm:$0x1]
    %v38 = vlaneseq
    %v39 = vshrl.u32 %v38, 7
    %v40 = vsub.s32 0, %v39
    %v41 = vrot.slane %v36, %v40
    %vm43 = vcmask 31744
    %v45 = vsel %vm43, %v34, 0
    %vm47 = vcmask 1043456
    %v49 = vsel %vm47, %v35, 0
    %51 = vmatprep.subr.mxu0 0.0
    %52 = vmatpush1.msra.mxu0 %v49
    %53 = vmatprep.subr.mxu0 0.0
    %54 = vmatpush1.msra.mxu0 0.0
    %55 = vmatprep.subr.mxu0 0.0
    %56 = vmatpush1.msra.mxu0 0.0
    %57 = vmatprep.subr.mxu0 0.0
    %58 = vmatpush1.msra.mxu0 0.0
    %59 = vmatprep.subr.mxu0 0.0
    %60 = vmatpush1.msra.mxu0 0.0
    %61 = vmatprep.subr.mxu0 0.0
    %62 = vmatpush1.msra.mxu0 0.0
    %63 = vmatprep.subr.mxu0 0.0
    %64 = vmatpush1.msra.mxu0 0.0
    %65 = vmatprep.subr.mxu0 0.0
    %66 = vmatpush1.msra.mxu0 0.0
    %67 = vmatprep.subr.mxu0 0.0
    %68 = vmatpush1.msra.mxu0 0.0
    %69 = vmatprep.subr.mxu0 0.0
    %70 = vmatpush1.msra.mxu0 0.0
    %71 = vmatprep.subr.mxu0 0.0
    %72 = vmatpush1.msra.mxu0 0.0
    %73 = vmatprep.subr.mxu0 0.0
    %74 = vmatpush1.msra.mxu0 0.0
    %75 = vmatprep.subr.mxu0 0.0
    %76 = vmatpush1.msra.mxu0 0.0
    %77 = vmatprep.subr.mxu0 0.0
    %78 = vmatpush1.msra.mxu0 0.0
    %79 = vmatprep.subr.mxu0 0.0
    %80 = vmatpush1.msra.mxu0 0.0
    %81 = vmatprep.subr.mxu0 0.0
    %82 = vmatpush1.msra.mxu0 0.0
    %83 = vmatprep.subr.mxu0 0.0
    %84 = vmatpush1.msra.mxu0 0.0
    %85 = vmatprep.subr.mxu0 0.0
    %86 = vmatpush1.msra.mxu0 0.0
    %87 = vmatprep.subr.mxu0 0.0
    %88 = vmatpush1.msra.mxu0 0.0
    %89 = vmatprep.subr.mxu0 0.0
    %90 = vmatpush1.msra.mxu0 0.0
    %91 = vmatprep.subr.mxu0 0.0
    %92 = vmatpush1.msra.mxu0 0.0
    %93 = vmatprep.subr.mxu0 0.0
    %94 = vmatpush1.msra.mxu0 0.0
    %95 = vmatprep.subr.mxu0 0.0
    %96 = vmatpush1.msra.mxu0 0.0
    %97 = vmatprep.subr.mxu0 0.0
    %98 = vmatpush1.msra.mxu0 0.0
    %99 = vmatprep.subr.mxu0 0.0
    %100 = vmatpush1.msra.mxu0 0.0
    %101 = vmatprep.subr.mxu0 0.0
    %102 = vmatpush1.msra.mxu0 0.0
    %103 = vmatprep.subr.mxu0 0.0
    %104 = vmatpush1.msra.mxu0 0.0
    %105 = vmatprep.subr.mxu0 0.0
    %106 = vmatpush1.msra.mxu0 0.0
    %107 = vmatprep.subr.mxu0 0.0
    %108 = vmatpush1.msra.mxu0 0.0
    %109 = vmatprep.subr.mxu0 0.0
    %110 = vmatpush1.msra.mxu0 0.0
    %111 = vmatprep.subr.mxu0 0.0
    %112 = vmatpush1.msra.mxu0 0.0
    %113 = vmatprep.subr.mxu0 0.0
    %114 = vmatpush1.msra.mxu0 0.0
    %115 = vmatprep.mubr.f32.mxu0 0.0
    %116 = vmatmul.mubr.f32.gmra.mrb[0].mxu0 %v45
    %v117 = vpop.f32.mrb[0].mxu0
    %v118 = vadd.f32 %v41, %v117
    %v119 = vpop.f32.mrb[0].mxu0
    %120 = vdwg.mxu0
    %v121 = vmax.f32 %v118, 0.0
    %v122 = vld [vmem:[#allocation2] sm:$0xff]
    %v123 = vld [vmem:[#allocation2 + $0x8] sm:$0xff]
    %v124 = vld [vmem:[#allocation2 + $0x10] sm:$0xff]
    %v125 = vld [vmem:[#allocation2 + $0x18] sm:$0xff]
    %v126 = vld [vmem:[%s4] sm:$0x1]
    %v128 = vlaneseq
    %v129 = vshrl.u32 %v128, 7
    %v130 = vsub.s32 0, %v129
    %v131 = vrot.slane %v126, %v130
    %vm133 = vcmask 261120
    %v135 = vsel %vm133, %v121, 0
    %137 = vmatprep.subr.mxu0 0.0
    %138 = vmatpush1.msra.mxu0 %v122
    %139 = vmatprep.subr.mxu0 0.0
    %140 = vmatpush1.msra.mxu0 %v123
    %141 = vmatprep.subr.mxu0 0.0
    %142 = vmatpush1.msra.mxu0 %v124
    %143 = vmatprep.subr.mxu0 0.0
    %144 = vmatpush1.msra.mxu0 %v125
    %145 = vmatprep.subr.mxu0 0.0
    %146 = vmatpush1.msra.mxu0 0.0
    %147 = vmatprep.subr.mxu0 0.0
    %148 = vmatpush1.msra.mxu0 0.0
    %149 = vmatprep.subr.mxu0 0.0
    %150 = vmatpush1.msra.mxu0 0.0
    %151 = vmatprep.subr.mxu0 0.0
    %152 = vmatpush1.msra.mxu0 0.0
    %153 = vmatprep.subr.mxu0 0.0
    %154 = vmatpush1.msra.mxu0 0.0
    %155 = vmatprep.subr.mxu0 0.0
    %156 = vmatpush1.msra.mxu0 0.0
    %157 = vmatprep.subr.mxu0 0.0
    %158 = vmatpush1.msra.mxu0 0.0
    %159 = vmatprep.subr.mxu0 0.0
    %160 = vmatpush1.msra.mxu0 0.0
    %161 = vmatprep.subr.mxu0 0.0
    %162 = vmatpush1.msra.mxu0 0.0
    %163 = vmatprep.subr.mxu0 0.0
    %164 = vmatpush1.msra.mxu0 0.0
    %165 = vmatprep.subr.mxu0 0.0
    %166 = vmatpush1.msra.mxu0 0.0
    %167 = vmatprep.subr.mxu0 0.0
    %168 = vmatpush1.msra.mxu0 0.0
    %169 = vmatprep.subr.mxu0 0.0
    %170 = vmatpush1.msra.mxu0 0.0
    %171 = vmatprep.subr.mxu0 0.0
    %172 = vmatpush1.msra.mxu0 0.0
    %173 = vmatprep.subr.mxu0 0.0
    %174 = vmatpush1.msra.mxu0 0.0
    %175 = vmatprep.subr.mxu0 0.0
    %176 = vmatpush1.msra.mxu0 0.0
    %177 = vmatprep.subr.mxu0 0.0
    %178 = vmatpush1.msra.mxu0 0.0
    %179 = vmatprep.subr.mxu0 0.0
    %180 = vmatpush1.msra.mxu0 0.0
    %181 = vmatprep.subr.mxu0 0.0
    %182 = vmatpush1.msra.mxu0 0.0
    %183 = vmatprep.subr.mxu0 0.0
    %184 = vmatpush1.msra.mxu0 0.0
    %185 = vmatprep.subr.mxu0 0.0
    %186 = vmatpush1.msra.mxu0 0.0
    %187 = vmatprep.subr.mxu0 0.0
    %188 = vmatpush1.msra.mxu0 0.0
    %189 = vmatprep.subr.mxu0 0.0
    %190 = vmatpush1.msra.mxu0 0.0
    %191 = vmatprep.subr.mxu0 0.0
    %192 = vmatpush1.msra.mxu0 0.0
    %193 = vmatprep.subr.mxu0 0.0
    %194 = vmatpush1.msra.mxu0 0.0
    %195 = vmatprep.subr.mxu0 0.0
    %196 = vmatpush1.msra.mxu0 0.0
    %197 = vmatprep.subr.mxu0 0.0
    %198 = vmatpush1.msra.mxu0 0.0
    %199 = vmatprep.subr.mxu0 0.0
    %200 = vmatpush1.msra.mxu0 0.0
    %201 = vmatprep.mubr.f32.mxu0 0.0
    %202 = vmatmul.mubr.f32.gmra.mrb[0].mxu0 %v135
    %v203 = vpop.f32.mrb[0].mxu0
    %v204 = vadd.f32 %v131, %v203
    %v205 = vpop.f32.mrb[0].mxu0
    %206 = vdwg.mxu0
    %vm207 = vcmask 15360
    %208 = vst.msk [vmem:[%s5] sm:$0xff] %vm207, %v204
    // Predicated region
    $region26: #{forward.1} parent=1 // pred_check
      _
    $region27: #{forward.1} parent=1 // pred_check_branch
      %210 = sbr.rel (0) target = $region29
    $region28: #{forward.1} parent=1 // pred_region
      _
    $region29: #{forward.1} parent=1 // pred_fallthru
      _
    // Predicated region
    $region30: #{forward.1} parent=1 // pred_check
      _
    $region31: #{forward.1} parent=1 // pred_check_branch
      %212 = sbr.rel (0) target = $region33
    $region32: #{forward.1} parent=1 // pred_region
      _
    $region33: #{forward.1} parent=1 // pred_fallthru
      _
    %213 = vsyncpa [#allocation3], 1

</llo_original>
